<compile_context>
chip_gen: v6e
topology: v6e:2x2x1
jax: 0.10.0
libtpu: 0.0.40
codegen_flags: <defaults>
</compile_context>

<pallas_src>
import numpy as np
import jax
import jax.numpy as jnp
from jax.experimental import pallas as pl
from jax.experimental.pallas import tpu as pltpu


def _pad8(n):
    return (n + 7) // 8 * 8


# --------------------------------------------------------------------------
# Kernel
# --------------------------------------------------------------------------
def make_anxiety_rnn_kernel(seq, bb, feat, hidden, in_fc, hid_fc, out_dim,
                            offs):
    o_wih, o_whh, o_brnn, o_w1h, o_w1s, o_b1, o_w2, o_b2 = offs

    def kernel(x_ref, xs_ref, p_ref, out_ref):
        # Slice the packed-param ref per section (no monolithic load; every
        # offset is 8-row aligned so slices stay sublane-tile aligned).
        w_ih = p_ref[o_wih:o_wih + feat, :hidden]          # (feat,   hidden)
        w_hh = p_ref[o_whh:o_whh + hidden, :hidden]        # (hidden, hidden)
        b_rnn = p_ref[o_brnn:o_brnn + 1, :hidden]          # (1, hidden) = b_ih+b_hh

        # Input projection hoisted out of the serial recurrence: one MXU dot
        # for all timesteps of this batch block.
        xw = jnp.dot(x_ref[...], w_ih,
                     preferred_element_type=jnp.float32) + b_rnn  # (seq*bb, H)

        # Peeled first step (h_{-1} = 0): no dot(0, W_hh).
        h = jnp.tanh(xw[:bb, :])
        # Fully unrolled remaining recurrence (seq is static & small); only
        # h @ W_hh + xw_t + tanh stays on the serial critical path.
        for t in range(1, seq):
            h = jnp.tanh(xw[t * bb:(t + 1) * bb, :]
                         + jnp.dot(h, w_hh,
                                   preferred_element_type=jnp.float32))

        # Dropout(0.3) is identity in eval mode.
        # rnn_last = h[:, hidden-1] folded into the MXU: w1h is zero except
        # row hidden-1 (= w_fc1[:, 0]), so dot(h, w1h) == rnn_last * w_fc1[:,0]
        # with no cross-lane extract/broadcast.
        w1h = p_ref[o_w1h:o_w1h + hidden, :hid_fc]          # (hidden, hid_fc)
        w1s = p_ref[o_w1s:o_w1s + in_fc, :hid_fc]           # (in_fc,  hid_fc)
        b1 = p_ref[o_b1:o_b1 + 1, :hid_fc]                  # (1, hid_fc)
        z1 = (jnp.dot(h, w1h, preferred_element_type=jnp.float32)
              + jnp.dot(xs_ref[...], w1s, preferred_element_type=jnp.float32)
              + b1)
        a1 = jnp.maximum(z1, 0.0)                           # ReLU

        b2 = p_ref[o_b2:o_b2 + 1, :out_dim]                 # (1, out_dim)
        if out_dim == 1:
            # N=1 matmul -> VPU multiply + lane reduction (no tiny MXU issue).
            w2 = p_ref[o_w2:o_w2 + 1, :hid_fc]              # (1, hid_fc)
            z2 = jnp.sum(a1 * w2, axis=-1, keepdims=True) + b2
        else:
            # Pre-transposed host-side: (hid_fc, out_dim), no in-kernel .T.
            w2t = p_ref[o_w2:o_w2 + hid_fc, :out_dim]
            z2 = jnp.dot(a1, w2t, preferred_element_type=jnp.float32) + b2

        out_ref[...] = jax.nn.sigmoid(z2)                   # (bb, out_dim)

    return kernel


# --------------------------------------------------------------------------
# Model-load-time packing (numpy; NOT on the per-call path)
# --------------------------------------------------------------------------
def pack_anxiety_rnn_params(params, feat):
    """Pack all weights into one lane-dense, 8-row-aligned VMEM buffer."""
    hidden = params["w_hh"].shape[0]
    hid_fc = params["w_fc1"].shape[0]
    in_fc = params["w_fc1"].shape[1] - 1
    out_dim = params["w_fc2"].shape[0]
    lanes = max(128, -(-max(hidden, hid_fc, out_dim) // 128) * 128)

    sections, offs, row = [], {}, 0

    def add(name, mat):
        nonlocal row
        mat = np.asarray(mat, np.float32)
        r, c = mat.shape
        blk = np.zeros((_pad8(r), lanes), np.float32)
        blk[:r, :c] = mat
        sections.append(blk)
        offs[name] = row
        row += _pad8(r)

    w1_t = np.asarray(params["w_fc1"], np.float32).T        # (1+in_fc, hid_fc)
    w1h = np.zeros((hidden, hid_fc), np.float32)
    w1h[hidden - 1, :] = w1_t[0, :]                         # rnn_last column

    add("w_ih", np.asarray(params["w_ih"], np.float32).T)   # (feat, hidden)
    add("w_hh", np.asarray(params["w_hh"], np.float32).T)   # (hidden, hidden)
    add("b_rnn", (np.asarray(params["b_ih"], np.float32)
                  + np.asarray(params["b_hh"], np.float32))[None, :])
    add("w1h", w1h)                                         # (hidden, hid_fc)
    add("w1s", w1_t[1:, :])                                 # (in_fc, hid_fc)
    add("b1", np.asarray(params["b_fc1"], np.float32)[None, :])
    if out_dim == 1:
        add("w2", np.asarray(params["w_fc2"], np.float32))          # (1, hid_fc)
    else:
        add("w2", np.asarray(params["w_fc2"], np.float32).T)        # (hid_fc, out_dim)
    add("b2", np.asarray(params["b_fc2"], np.float32)[None, :])

    packed = jnp.asarray(np.concatenate(sections, axis=0))
    offsets = (offs["w_ih"], offs["w_hh"], offs["b_rnn"], offs["w1h"],
               offs["w1s"], offs["b1"], offs["w2"], offs["b2"])
    dims = dict(feat=feat, hidden=hidden, in_fc=in_fc, hid_fc=hid_fc,
                out_dim=out_dim)
    return packed, offsets, dims


# --------------------------------------------------------------------------
# Forward wrapper
# --------------------------------------------------------------------------
def anxiety_rnn_forward(x_t, x_s, packed, offsets, dims, *, block_batch=256):
    """x_t: (batch, seq) or (batch, seq, feat); x_s: (batch, input_dim_fc)."""
    if x_t.ndim == 2:
        x_t = x_t[..., None]
    batch, seq, feat = x_t.shape
    in_fc, out_dim = dims["in_fc"], dims["out_dim"]

    # Batch block (multiple of 8); pad batch so every in-kernel
    # xw[t*bb:(t+1)*bb] slice stays sublane-tile aligned (copy-free).
    bb = min(_pad8(batch), _pad8(block_batch))
    padded_batch = -(-batch // bb) * bb
    pad = padded_batch - batch

    x_t = jnp.asarray(x_t, jnp.float32)
    x_s = jnp.asarray(x_s, jnp.float32)
    if pad:
        x_t = jnp.pad(x_t, ((0, pad), (0, 0), (0, 0)))
        x_s = jnp.pad(x_s, ((0, pad), (0, 0)))

    n_blocks = padded_batch // bb
    # Layout so each grid step reads one contiguous, time-major 2-D slab:
    # x_blocks[i, t*bb + j, :] = x_t[i*bb + j, t, :]
    x_blocks = jnp.reshape(
        jnp.transpose(jnp.reshape(x_t, (n_blocks, bb, seq, feat)),
                      (0, 2, 1, 3)),
        (n_blocks, seq * bb, feat))

    kernel = make_anxiety_rnn_kernel(seq, bb, feat, dims["hidden"], in_fc,
                                     dims["hid_fc"], out_dim, offsets)

    out = pl.pallas_call(
        kernel,
        out_shape=jax.ShapeDtypeStruct((padded_batch, out_dim), jnp.float32),
        grid=(n_blocks,),
        in_specs=[
            pl.BlockSpec((None, seq * bb, feat), lambda i: (i, 0, 0)),
            pl.BlockSpec((bb, in_fc), lambda i: (i, 0)),
            pl.BlockSpec(packed.shape, lambda i: (0, 0)),
        ],
        out_specs=pl.BlockSpec((bb, out_dim), lambda i: (i, 0)),
        compiler_params=pltpu.CompilerParams(
            dimension_semantics=("parallel",)),
    )(x_blocks, x_s, packed)
    return out[:batch]


# --------------------------------------------------------------------------
# Pure-JAX reference mirroring the PyTorch forward (eval mode)
# --------------------------------------------------------------------------
def anxiety_rnn_reference(x_t, x_s, params):
    if x_t.ndim == 2:
        x_t = x_t[..., None]
    batch, seq, feat = x_t.shape
    h = jnp.zeros((batch, params["w_hh"].shape[0]), jnp.float32)
    for t in range(seq):
        h = jnp.tanh(x_t[:, t, :] @ params["w_ih"].T + params["b_ih"]
                     + h @ params["w_hh"].T + params["b_hh"])
    rnn_last = h[:, -1:]
    x_cat = jnp.concatenate([rnn_last, x_s], axis=1)
    a1 = jax.nn.relu(x_cat @ params["w_fc1"].T + params["b_fc1"])
    return jax.nn.sigmoid(a1 @ params["w_fc2"].T + params["b_fc2"])


def init_params(key, input_dim_rnn, hidden_dim_rnn, input_dim_fc,
                hidden_dim_fc, output_dim):
    """Deterministic PyTorch-style uniform init (no checkpoint load)."""
    ks = jax.random.split(key, 8)
    k_rnn = 1.0 / np.sqrt(hidden_dim_rnn)
    k_fc1 = 1.0 / np.sqrt(1 + input_dim_fc)
    k_fc2 = 1.0 / np.sqrt(hidden_dim_fc)
    u = lambda k, shape, b: jax.random.uniform(k, shape, jnp.float32, -b, b)
    return {
        "w_ih": u(ks[0], (hidden_dim_rnn, input_dim_rnn), k_rnn),
        "w_hh": u(ks[1], (hidden_dim_rnn, hidden_dim_rnn), k_rnn),
        "b_ih": u(ks[2], (hidden_dim_rnn,), k_rnn),
        "b_hh": u(ks[3], (hidden_dim_rnn,), k_rnn),
        "w_fc1": u(ks[4], (hidden_dim_fc, 1 + input_dim_fc), k_fc1),
        "b_fc1": u(ks[5], (hidden_dim_fc,), k_fc1),
        "w_fc2": u(ks[6], (output_dim, hidden_dim_fc), k_fc2),
        "b_fc2": u(ks[7], (output_dim,), k_fc2),
    }


if __name__ == "__main__":
    # Small shapes consistent with the module's forward.
    batch, seq = 8, 8
    input_dim_rnn = 4      # n_features of x_t
    hidden_dim_rnn = 32
    n_layers_rnn = 1       # single RNN layer (inter-layer dropout unused)
    input_dim_fc = 4       # static features x_s
    hidden_dim_fc = 16     # two-layer FC head
    output_dim = 1

    key = jax.random.PRNGKey(0)
    k_params, k_xt, k_xs = jax.random.split(key, 3)
    params = init_params(k_params, input_dim_rnn, hidden_dim_rnn,
                         input_dim_fc, hidden_dim_fc, output_dim)

    # Model-load-time packing: hoisted out of the per-call path.
    packed, offsets, dims = pack_anxiety_rnn_params(params, input_dim_rnn)

    x_t = jax.random.normal(k_xt, (batch, seq, input_dim_rnn), jnp.float32)
    x_s = jax.random.normal(k_xs, (batch, input_dim_fc), jnp.float32)

    out = anxiety_rnn_forward(x_t, x_s, packed, offsets, dims)
    out = jax.block_until_ready(out)

    ref = anxiety_rnn_reference(x_t, x_s, params)
    assert out.shape == (batch, output_dim)
    np.testing.assert_allclose(np.asarray(out), np.asarray(ref),
                               rtol=1e-5, atol=1e-5)
    print("KERNEL_OK")
</pallas_src>

<mosaic_0001>
module attributes {stable_mosaic.version = 11 : i64} {
  func.func @kernel(%arg0: i32, %arg1: memref<1x64x4xf32, #tpu.memory_space<vmem>>, %arg2: memref<8x4xf32, #tpu.memory_space<vmem>>, %arg3: memref<112x128xf32, #tpu.memory_space<vmem>>, %arg4: memref<8x1xf32, #tpu.memory_space<vmem>>) attributes {dimension_semantics = [#tpu.dimension_semantics<parallel>], iteration_bounds = array<i64: 1>, scalar_prefetch = 0 : i64, scratch_operands = 0 : i64, tpu.core_type = #tpu.core_type<tc>, window_params = [{transform_indices = @transform_0, window_bounds = array<i64: 1, 64, 4>}, {transform_indices = @transform_1, window_bounds = array<i64: 8, 4>}, {pipeline_mode = #tpu.pipeline_mode<synchronous>, transform_indices = @transform_2, window_bounds = array<i64: 112, 128>}, {transform_indices = @transform_3, window_bounds = array<i64: 8, 1>}]} {
    %c0 = arith.constant 0 : index
    %c0_0 = arith.constant 0 : index
    %0 = vector.load %arg3[%c0, %c0_0] : memref<112x128xf32, #tpu.memory_space<vmem>>, vector<4x32xf32>
    %c8 = arith.constant 8 : index
    %c0_1 = arith.constant 0 : index
    %1 = vector.load %arg3[%c8, %c0_1] : memref<112x128xf32, #tpu.memory_space<vmem>>, vector<32x32xf32>
    %c40 = arith.constant 40 : index
    %c0_2 = arith.constant 0 : index
    %2 = vector.load %arg3[%c40, %c0_2] : memref<112x128xf32, #tpu.memory_space<vmem>>, vector<1x32xf32>
    %c0_3 = arith.constant 0 : index
    %c0_4 = arith.constant 0 : index
    %c0_5 = arith.constant 0 : index
    %3 = vector.load %arg1[%c0_3, %c0_4, %c0_5] : memref<1x64x4xf32, #tpu.memory_space<vmem>>, vector<1x64x4xf32>
    %4 = vector.shape_cast %3 : vector<1x64x4xf32> to vector<64x4xf32>
    %cst = arith.constant dense<0.000000e+00> : vector<64x32xf32>
    %5 = tpu.matmul %4, %0, %cst {dimension_numbers = #tpu.dot_dimension_numbers<[1], [0], [0], [1], [0, 0, 1, 1], [], []>} : vector<64x4xf32>, vector<4x32xf32>, vector<64x32xf32> -> vector<64x32xf32>
    %6 = vector.broadcast %2 : vector<1x32xf32> to vector<64x32xf32>
    %7 = arith.addf %5, %6 : vector<64x32xf32>
    %8 = vector.extract_strided_slice %7 {offsets = [0, 0], sizes = [8, 32], strides = [1, 1]} : vector<64x32xf32> to vector<8x32xf32>
    %9 = math.tanh %8 : vector<8x32xf32>
    %10 = vector.extract_strided_slice %7 {offsets = [8, 0], sizes = [8, 32], strides = [1, 1]} : vector<64x32xf32> to vector<8x32xf32>
    %cst_6 = arith.constant dense<0.000000e+00> : vector<8x32xf32>
    %11 = tpu.matmul %9, %1, %cst_6 {dimension_numbers = #tpu.dot_dimension_numbers<[1], [0], [0], [1], [0, 0, 1, 1], [], []>} : vector<8x32xf32>, vector<32x32xf32>, vector<8x32xf32> -> vector<8x32xf32>
    %12 = arith.addf %10, %11 : vector<8x32xf32>
    %13 = math.tanh %12 : vector<8x32xf32>
    %14 = vector.extract_strided_slice %7 {offsets = [16, 0], sizes = [8, 32], strides = [1, 1]} : vector<64x32xf32> to vector<8x32xf32>
    %cst_7 = arith.constant dense<0.000000e+00> : vector<8x32xf32>
    %15 = tpu.matmul %13, %1, %cst_7 {dimension_numbers = #tpu.dot_dimension_numbers<[1], [0], [0], [1], [0, 0, 1, 1], [], []>} : vector<8x32xf32>, vector<32x32xf32>, vector<8x32xf32> -> vector<8x32xf32>
    %16 = arith.addf %14, %15 : vector<8x32xf32>
    %17 = math.tanh %16 : vector<8x32xf32>
    %18 = vector.extract_strided_slice %7 {offsets = [24, 0], sizes = [8, 32], strides = [1, 1]} : vector<64x32xf32> to vector<8x32xf32>
    %cst_8 = arith.constant dense<0.000000e+00> : vector<8x32xf32>
    %19 = tpu.matmul %17, %1, %cst_8 {dimension_numbers = #tpu.dot_dimension_numbers<[1], [0], [0], [1], [0, 0, 1, 1], [], []>} : vector<8x32xf32>, vector<32x32xf32>, vector<8x32xf32> -> vector<8x32xf32>
    %20 = arith.addf %18, %19 : vector<8x32xf32>
    %21 = math.tanh %20 : vector<8x32xf32>
    %22 = vector.extract_strided_slice %7 {offsets = [32, 0], sizes = [8, 32], strides = [1, 1]} : vector<64x32xf32> to vector<8x32xf32>
    %cst_9 = arith.constant dense<0.000000e+00> : vector<8x32xf32>
    %23 = tpu.matmul %21, %1, %cst_9 {dimension_numbers = #tpu.dot_dimension_numbers<[1], [0], [0], [1], [0, 0, 1, 1], [], []>} : vector<8x32xf32>, vector<32x32xf32>, vector<8x32xf32> -> vector<8x32xf32>
    %24 = arith.addf %22, %23 : vector<8x32xf32>
    %25 = math.tanh %24 : vector<8x32xf32>
    %26 = vector.extract_strided_slice %7 {offsets = [40, 0], sizes = [8, 32], strides = [1, 1]} : vector<64x32xf32> to vector<8x32xf32>
    %cst_10 = arith.constant dense<0.000000e+00> : vector<8x32xf32>
    %27 = tpu.matmul %25, %1, %cst_10 {dimension_numbers = #tpu.dot_dimension_numbers<[1], [0], [0], [1], [0, 0, 1, 1], [], []>} : vector<8x32xf32>, vector<32x32xf32>, vector<8x32xf32> -> vector<8x32xf32>
    %28 = arith.addf %26, %27 : vector<8x32xf32>
    %29 = math.tanh %28 : vector<8x32xf32>
    %30 = vector.extract_strided_slice %7 {offsets = [48, 0], sizes = [8, 32], strides = [1, 1]} : vector<64x32xf32> to vector<8x32xf32>
    %cst_11 = arith.constant dense<0.000000e+00> : vector<8x32xf32>
    %31 = tpu.matmul %29, %1, %cst_11 {dimension_numbers = #tpu.dot_dimension_numbers<[1], [0], [0], [1], [0, 0, 1, 1], [], []>} : vector<8x32xf32>, vector<32x32xf32>, vector<8x32xf32> -> vector<8x32xf32>
    %32 = arith.addf %30, %31 : vector<8x32xf32>
    %33 = math.tanh %32 : vector<8x32xf32>
    %34 = vector.extract_strided_slice %7 {offsets = [56, 0], sizes = [8, 32], strides = [1, 1]} : vector<64x32xf32> to vector<8x32xf32>
    %cst_12 = arith.constant dense<0.000000e+00> : vector<8x32xf32>
    %35 = tpu.matmul %33, %1, %cst_12 {dimension_numbers = #tpu.dot_dimension_numbers<[1], [0], [0], [1], [0, 0, 1, 1], [], []>} : vector<8x32xf32>, vector<32x32xf32>, vector<8x32xf32> -> vector<8x32xf32>
    %36 = arith.addf %34, %35 : vector<8x32xf32>
    %37 = math.tanh %36 : vector<8x32xf32>
    %c48 = arith.constant 48 : index
    %c0_13 = arith.constant 0 : index
    %38 = vector.load %arg3[%c48, %c0_13] : memref<112x128xf32, #tpu.memory_space<vmem>>, vector<32x16xf32>
    %c80 = arith.constant 80 : index
    %c0_14 = arith.constant 0 : index
    %39 = vector.load %arg3[%c80, %c0_14] : memref<112x128xf32, #tpu.memory_space<vmem>>, vector<4x16xf32>
    %c88 = arith.constant 88 : index
    %c0_15 = arith.constant 0 : index
    %40 = vector.load %arg3[%c88, %c0_15] : memref<112x128xf32, #tpu.memory_space<vmem>>, vector<1x16xf32>
    %cst_16 = arith.constant dense<0.000000e+00> : vector<8x16xf32>
    %41 = tpu.matmul %37, %38, %cst_16 {dimension_numbers = #tpu.dot_dimension_numbers<[1], [0], [0], [1], [0, 0, 1, 1], [], []>} : vector<8x32xf32>, vector<32x16xf32>, vector<8x16xf32> -> vector<8x16xf32>
    %c0_17 = arith.constant 0 : index
    %c0_18 = arith.constant 0 : index
    %42 = vector.load %arg2[%c0_17, %c0_18] : memref<8x4xf32, #tpu.memory_space<vmem>>, vector<8x4xf32>
    %cst_19 = arith.constant dense<0.000000e+00> : vector<8x16xf32>
    %43 = tpu.matmul %42, %39, %cst_19 {dimension_numbers = #tpu.dot_dimension_numbers<[1], [0], [0], [1], [0, 0, 1, 1], [], []>} : vector<8x4xf32>, vector<4x16xf32>, vector<8x16xf32> -> vector<8x16xf32>
    %44 = arith.addf %41, %43 : vector<8x16xf32>
    %45 = vector.broadcast %40 : vector<1x16xf32> to vector<8x16xf32>
    %46 = arith.addf %44, %45 : vector<8x16xf32>
    %cst_20 = arith.constant 0.000000e+00 : f32
    %47 = vector.broadcast %cst_20 : f32 to vector<8x16xf32>
    %48 = arith.maximumf %46, %47 : vector<8x16xf32>
    %c104 = arith.constant 104 : index
    %c0_21 = arith.constant 0 : index
    %49 = vector.load %arg3[%c104, %c0_21] : memref<112x128xf32, #tpu.memory_space<vmem>>, vector<1x1xf32>
    %c96 = arith.constant 96 : index
    %c0_22 = arith.constant 0 : index
    %50 = vector.load %arg3[%c96, %c0_22] : memref<112x128xf32, #tpu.memory_space<vmem>>, vector<1x16xf32>
    %51 = vector.broadcast %50 : vector<1x16xf32> to vector<8x16xf32>
    %52 = arith.mulf %48, %51 : vector<8x16xf32>
    %cst_23 = arith.constant dense<0.000000e+00> : vector<8xf32>
    %53 = vector.multi_reduction <add>, %52, %cst_23 [1] : vector<8x16xf32> to vector<8xf32>
    %54 = vector.shape_cast %53 : vector<8xf32> to vector<8x1xf32>
    %55 = vector.broadcast %49 : vector<1x1xf32> to vector<8x1xf32>
    %56 = arith.addf %54, %55 : vector<8x1xf32>
    %57 = arith.negf %56 : vector<8x1xf32>
    %58 = math.exp %57 : vector<8x1xf32>
    %cst_24 = arith.constant 1.000000e+00 : f32
    %59 = vector.broadcast %cst_24 : f32 to vector<8x1xf32>
    %60 = arith.addf %59, %58 : vector<8x1xf32>
    %61 = arith.divf %59, %60 : vector<8x1xf32>
    %c0_25 = arith.constant 0 : index
    %c0_26 = arith.constant 0 : index
    %62 = vector.load %arg4[%c0_25, %c0_26] : memref<8x1xf32, #tpu.memory_space<vmem>>, vector<8x1xf32>
    tpu.vector_store %arg4[%c0_25, %c0_26], %61 {strides = array<i32>} : memref<8x1xf32, #tpu.memory_space<vmem>>, vector<8x1xf32>,
    return
  }
  func.func @transform_0(%arg0: i32) -> (i32, i32, i32) {
    %c0_i32 = arith.constant 0 : i32
    %c0_i32_0 = arith.constant 0 : i32
    %c0_i32_1 = arith.constant 0 : i32
    return %arg0, %c0_i32, %c0_i32_0 : i32, i32, i32
  }
  func.func @transform_1(%arg0: i32) -> (i32, i32) {
    %c0_i32 = arith.constant 0 : i32
    %c0_i32_0 = arith.constant 0 : i32
    return %arg0, %c0_i32 : i32, i32
  }
  func.func @transform_2(%arg0: i32) -> (i32, i32) {
    %c0_i32 = arith.constant 0 : i32
    %c0_i32_0 = arith.constant 0 : i32
    %c0_i32_1 = arith.constant 0 : i32
    return %c0_i32, %c0_i32_0 : i32, i32
  }
  func.func @transform_3(%arg0: i32) -> (i32, i32) {
    %c0_i32 = arith.constant 0 : i32
    %c0_i32_0 = arith.constant 0 : i32
    return %arg0, %c0_i32 : i32, i32
  }
}

</mosaic_0001>

<llo_original>
// kernel: tpu_custom_call.1
$region0: #{tpu_custom_call.1}
  #allocation0 [shape = 'u32[]', space=smem, size = 0x4, offset = 0x4, fixed_abs, tag = 'smem constant byte address 0x4 - core index']
  #allocation1 [shape = 'u32[144,128]{1,0:T(1,128)}', space=vmem, size = 0x12000, scoped, tag = 'internal scratch']
  %s0 = inlined_call_operand.vmem [shape: f32[1,64,4], index: 0, kind: input, shape index: {}]
  %s1 = inlined_call_operand.vmem [shape: f32[8,4], index: 1, kind: input, shape index: {}]
  %s2 = inlined_call_operand.hbm [shape: f32[112,128], index: 2, kind: input, shape index: {}]
  %s3 = inlined_call_operand.vmem [shape: f32[8,1], index: 3, kind: output, shape index: {}]
  %s4 = sld [smem:[#allocation0]]
  $region26: #{tpu_custom_call.1} parent=0
    _
  %s6 = ssub.s32 1, %s4
  %s7 = scalar_select 0, %s6, %s4
  $region1: #{tpu_custom_call.1} parent=0
    #allocation2 [shape = 'u8[57344]{0}', space=vmem, size = 0xe000, scoped, tag = 'input window, operand 2, single buffered']
    #allocation3 [shape = 's32[1]{0}', space=sflag, size = 0x4, scoped, tag = 'scoped memory for tpu_custom_call.1']
    %8 = vsyncpa [#allocation3], 0
    // Predicated region
    $region2: #{tpu_custom_call.1} parent=1 // pred_check
      _
    $region3: #{tpu_custom_call.1} parent=1 // pred_check_branch
      %10 = sbr.rel (0) target = $region5
    $region4: #{tpu_custom_call.1} parent=1 // pred_region
      _
    $region5: #{tpu_custom_call.1} parent=1 // pred_fallthru
      _
    // Predicated region
    $region6: #{tpu_custom_call.1} parent=1 // pred_check
      _
    $region7: #{tpu_custom_call.1} parent=1 // pred_check_branch
      %12 = sbr.rel (0) target = $region9
    $region8: #{tpu_custom_call.1} parent=1 // pred_region
      _
    $region9: #{tpu_custom_call.1} parent=1 // pred_fallthru
      _
    // Predicated region
    $region10: #{tpu_custom_call.1} parent=1 // pred_check
      _
    $region11: #{tpu_custom_call.1} parent=1 // pred_check_branch
      %14 = sbr.rel (0) target = $region13
    $region12: #{tpu_custom_call.1} parent=1 // pred_region
      %s16 = ssub.s32 1792, 1792
      %17 = vsyncadd [#allocation3], %s16
      %s18 = sshll.u32 [#allocation2], 4
      %s19 = int_to_ptr.vmem [resolvable:$true] %s18
      %24 = dma.hbm_to_vmem [thread:$0]  %s2, 1792, %s19, [#allocation3], 128, 128, 8
    $region13: #{tpu_custom_call.1} parent=1 // pred_fallthru
      _
    // Predicated region
    $region14: #{tpu_custom_call.1} parent=1 // pred_check
      _
    $region15: #{tpu_custom_call.1} parent=1 // pred_check_branch
      %26 = sbr.rel (0) target = $region17
    $region16: #{tpu_custom_call.1} parent=1 // pred_region
      %27 = dma.done [#allocation3], 1792
    $region17: #{tpu_custom_call.1} parent=1 // pred_fallthru
      _
    %v28 = vld [vmem:[#allocation2] sm:$0xf]
    %v29 = vld [vmem:[#allocation2 + $0x8] sm:$0xff]
    %v30 = vld [vmem:[#allocation2 + $0x10] sm:$0xff]
    %v31 = vld [vmem:[#allocation2 + $0x18] sm:$0xff]
    %v32 = vld [vmem:[#allocation2 + $0x20] sm:$0xff]
    %v33 = vld [vmem:[#allocation2 + $0x28] sm:$0x1]
    %v34 = vld [vmem:[%s0] sm:$0xff]
    %v35 = vld [vmem:[%s0 + $0x8] sm:$0xff]
    %v36 = vld [vmem:[%s0 + $0x10] sm:$0xff]
    %v37 = vld [vmem:[%s0 + $0x18] sm:$0xff]
    %v38 = vld [vmem:[%s0 + $0x20] sm:$0xff]
    %v39 = vld [vmem:[%s0 + $0x28] sm:$0xff]
    %v40 = vld [vmem:[%s0 + $0x30] sm:$0xff]
    %v41 = vld [vmem:[%s0 + $0x38] sm:$0xff]
    %v42 = vlaneseq
    %v43 = vshrl.u32 %v42, 7
    %v44 = vsub.s32 0, %v43
    %v45 = vrot.slane %v33, %v44
    %vm46 = vcmask 31744
    %v48 = vsel %vm46, %v34, 0
    %v51 = vsel %vm46, %v35, 0
    %v54 = vsel %vm46, %v36, 0
    %v57 = vsel %vm46, %v37, 0
    %v60 = vsel %vm46, %v38, 0
    %v63 = vsel %vm46, %v39, 0
    %v66 = vsel %vm46, %v40, 0
    %v69 = vsel %vm46, %v41, 0
    %vm71 = vcmask 1043456
    %v73 = vsel %vm71, %v28, 0
    %75 = vmatprep.subr.mxu0 0.0
    %76 = vmatpush1.msra.mxu0 0.0
    %77 = vmatprep.subr.mxu0 0.0
    %78 = vmatpush1.msra.mxu0 0.0
    %79 = vmatprep.subr.mxu0 0.0
    %80 = vmatpush1.msra.mxu0 0.0
    %81 = vmatprep.subr.mxu0 0.0
    %82 = vmatpush1.msra.mxu0 0.0
    %83 = vmatprep.subr.mxu0 0.0
    %84 = vmatpush1.msra.mxu0 0.0
    %85 = vmatprep.subr.mxu0 0.0
    %86 = vmatpush1.msra.mxu0 0.0
    %87 = vmatprep.subr.mxu0 0.0
    %88 = vmatpush1.msra.mxu0 0.0
    %89 = vmatprep.subr.mxu0 0.0
    %90 = vmatpush1.msra.mxu0 0.0
    %91 = vmatprep.subr.mxu0 0.0
    %92 = vmatpush1.msra.mxu0 0.0
    %93 = vmatprep.subr.mxu0 0.0
    %94 = vmatpush1.msra.mxu0 0.0
    %95 = vmatprep.subr.mxu0 0.0
    %96 = vmatpush1.msra.mxu0 0.0
    %97 = vmatprep.subr.mxu0 0.0
    %98 = vmatpush1.msra.mxu0 0.0
    %99 = vmatprep.subr.mxu0 0.0
    %100 = vmatpush1.msra.mxu0 0.0
    %101 = vmatprep.subr.mxu0 0.0
    %102 = vmatpush1.msra.mxu0 0.0
    %103 = vmatprep.subr.mxu0 0.0
    %104 = vmatpush1.msra.mxu0 0.0
    %105 = vmatprep.subr.mxu0 0.0
    %106 = vmatpush1.msra.mxu0 %v73
    %107 = vmatprep.subr.mxu0 0.0
    %108 = vmatpush2.msra.mxu0 0.0
    %109 = vmatprep.subr.mxu0 0.0
    %110 = vmatpush2.msra.mxu0 0.0
    %111 = vmatprep.subr.mxu0 0.0
    %112 = vmatpush2.msra.mxu0 0.0
    %113 = vmatprep.subr.mxu0 0.0
    %114 = vmatpush2.msra.mxu0 0.0
    %115 = vmatprep.subr.mxu0 0.0
    %116 = vmatpush2.msra.mxu0 0.0
    %117 = vmatprep.subr.mxu0 0.0
    %118 = vmatpush2.msra.mxu0 0.0
    %119 = vmatprep.subr.mxu0 0.0
    %120 = vmatpush2.msra.mxu0 0.0
    %121 = vmatprep.subr.mxu0 0.0
    %122 = vmatpush2.msra.mxu0 0.0
    %123 = vmatprep.subr.mxu0 0.0
    %124 = vmatpush2.msra.mxu0 0.0
    %125 = vmatprep.subr.mxu0 0.0
    %126 = vmatpush2.msra.mxu0 0.0
    %127 = vmatprep.subr.mxu0 0.0
    %128 = vmatpush2.msra.mxu0 0.0
    %129 = vmatprep.subr.mxu0 0.0
    %130 = vmatpush2.msra.mxu0 0.0
    %131 = vmatprep.subr.mxu0 0.0
    %132 = vmatpush2.msra.mxu0 0.0
    %133 = vmatprep.subr.mxu0 0.0
    %134 = vmatpush2.msra.mxu0 0.0
    %135 = vmatprep.subr.mxu0 0.0
    %136 = vmatpush2.msra.mxu0 0.0
    %137 = vmatprep.subr.mxu0 0.0
    %138 = vmatpush2.msra.mxu0 0.0
    %139 = vmatprep.mubr.f32.mxu0 0.0
    %140 = vmatmul.mubr.f32.gmra.mxu0 %v48
    %v141 = vpop.f32.mrf.mxu0
    %v142 = vadd.f32 %v45, %v141
    %v143 = vpop.f32.mrf.mxu0
    %144 = vmatprep.mubr.f32.mxu0 0.0
    %145 = vmatmul.mubr.f32.gmra.mxu0 %v51
    %v146 = vpop.f32.mrf.mxu0
    %v147 = vadd.f32 %v45, %v146
    %v148 = vpop.f32.mrf.mxu0
    %149 = vmatprep.mubr.f32.mxu0 0.0
    %150 = vmatmul.mubr.f32.gmra.mxu0 %v54
    %v151 = vpop.f32.mrf.mxu0
    %v152 = vadd.f32 %v45, %v151
    %v153 = vpop.f32.mrf.mxu0
    %154 = vmatprep.mubr.f32.mxu0 0.0
    %155 = vmatmul.mubr.f32.gmra.mxu0 %v57
    %v156 = vpop.f32.mrf.mxu0
    %v157 = vadd.f32 %v45, %v156
    %v158 = vpop.f32.mrf.mxu0
    %159 = vmatprep.mubr.f32.mxu0 0.0
    %160 = vmatmul.mubr.f32.gmra.mxu0 %v60
    %v161 = vpop.f32.mrf.mxu0
    %v162 = vadd.f32 %v45, %v161
    %v163 = vpop.f32.mrf.mxu0
    %164 = vmatprep.mubr.f32.mxu0 0.0
    %165 = vmatmul.mubr.f32.gmra.mxu0 %v63
    %v166 = vpop.f32.mrf.mxu0
    %v167 = vadd.f32 %v45, %v166
    %v168 = vpop.f32.mrf.mxu0
    %169 = vmatprep.mubr.f32.mxu0 0.0
    %170 = vmatmul.mubr.f32.gmra.mxu0 %v66
    %v171 = vpop.f32.mrf.mxu0
    %v172 = vadd.f32 %v45, %v171
    %v173 = vpop.f32.mrf.mxu0
    %174 = vmatprep.mubr.f32.mxu0 0.0
    %175 = vmatmul.mubr.f32.gmra.mxu0 %v69
    %v176 = vpop.f32.mrf.mxu0
    %v177 = vadd.f32 %v45, %v176
    %v178 = vpop.f32.mrf.mxu0
    %179 = vdwg.mxu0
    %v180 = vtanh.pop %v142
    %vm181 = vcmask 261120
    %v183 = vsel %vm181, %v180, 0
    %185 = vmatprep.subr.mxu0 0.0
    %186 = vmatpush1.msra.mxu0 0.0
    %187 = vmatprep.subr.mxu0 0.0
    %188 = vmatpush1.msra.mxu0 0.0
    %189 = vmatprep.subr.mxu0 0.0
    %190 = vmatpush1.msra.mxu0 0.0
    %191 = vmatprep.subr.mxu0 0.0
    %192 = vmatpush1.msra.mxu0 0.0
    %193 = vmatprep.subr.mxu0 0.0
    %194 = vmatpush1.msra.mxu0 0.0
    %195 = vmatprep.subr.mxu0 0.0
    %196 = vmatpush1.msra.mxu0 0.0
    %197 = vmatprep.subr.mxu0 0.0
    %198 = vmatpush1.msra.mxu0 0.0
    %199 = vmatprep.subr.mxu0 0.0
    %200 = vmatpush1.msra.mxu0 0.0
    %201 = vmatprep.subr.mxu0 0.0
    %202 = vmatpush1.msra.mxu0 0.0
    %203 = vmatprep.subr.mxu0 0.0
    %204 = vmatpush1.msra.mxu0 0.0
    %205 = vmatprep.subr.mxu0 0.0
    %206 = vmatpush1.msra.mxu0 0.0
    %207 = vmatprep.subr.mxu0 0.0
    %208 = vmatpush1.msra.mxu0 0.0
    %209 = vmatprep.subr.mxu0 0.0
    %210 = vmatpush1.msra.mxu0 %v32
    %211 = vmatprep.subr.mxu0 0.0
    %212 = vmatpush1.msra.mxu0 %v31
    %213 = vmatprep.subr.mxu0 0.0
    %214 = vmatpush1.msra.mxu0 %v30
    %215 = vmatprep.subr.mxu0 0.0
    %216 = vmatpush1.msra.mxu0 %v29
    %217 = vmatprep.subr.mxu0 0.0
    %218 = vmatpush2.msra.mxu0 0.0
    %219 = vmatprep.subr.mxu0 0.0
    %220 = vmatpush2.msra.mxu0 0.0
    %221 = vmatprep.subr.mxu0 0.0
    %222 = vmatpush2.msra.mxu0 0.0
    %223 = vmatprep.subr.mxu0 0.0
    %224 = vmatpush2.msra.mxu0 0.0
    %225 = vmatprep.subr.mxu0 0.0
    %226 = vmatpush2.msra.mxu0 0.0
    %227 = vmatprep.subr.mxu0 0.0
    %228 = vmatpush2.msra.mxu0 0.0
    %229 = vmatprep.subr.mxu0 0.0
    %230 = vmatpush2.msra.mxu0 0.0
    %231 = vmatprep.subr.mxu0 0.0
    %232 = vmatpush2.msra.mxu0 0.0
    %233 = vmatprep.subr.mxu0 0.0
    %234 = vmatpush2.msra.mxu0 0.0
    %235 = vmatprep.subr.mxu0 0.0
    %236 = vmatpush2.msra.mxu0 0.0
    %237 = vmatprep.subr.mxu0 0.0
    %238 = vmatpush2.msra.mxu0 0.0
    %239 = vmatprep.subr.mxu0 0.0
    %240 = vmatpush2.msra.mxu0 0.0
    %241 = vmatprep.subr.mxu0 0.0
    %242 = vmatpush2.msra.mxu0 0.0
    %243 = vmatprep.subr.mxu0 0.0
    %244 = vmatpush2.msra.mxu0 0.0
    %245 = vmatprep.subr.mxu0 0.0
    %246 = vmatpush2.msra.mxu0 0.0
    %247 = vmatprep.subr.mxu0 0.0
    %248 = vmatpush2.msra.mxu0 0.0
    %249 = vmatprep.mubr.f32.mxu0 0.0
    %250 = vmatmul.mubr.f32.gmra.mxu0 %v183
    %v251 = vpop.f32.mrf.mxu0
    %v252 = vadd.f32 0.0, %v251
    %v253 = vpop.f32.mrf.mxu0
    %254 = vdwg.mxu0
    %v255 = vadd.f32 %v147, %v252
    %v256 = vtanh.pop %v255
    %v258 = vsel %vm181, %v256, 0
    %260 = vmatprep.subr.mxu0 0.0
    %261 = vmatpush1.msra.mxu0 0.0
    %262 = vmatprep.subr.mxu0 0.0
    %263 = vmatpush1.msra.mxu0 0.0
    %264 = vmatprep.subr.mxu0 0.0
    %265 = vmatpush1.msra.mxu0 0.0
    %266 = vmatprep.subr.mxu0 0.0
    %267 = vmatpush1.msra.mxu0 0.0
    %268 = vmatprep.subr.mxu0 0.0
    %269 = vmatpush1.msra.mxu0 0.0
    %270 = vmatprep.subr.mxu0 0.0
    %271 = vmatpush1.msra.mxu0 0.0
    %272 = vmatprep.subr.mxu0 0.0
    %273 = vmatpush1.msra.mxu0 0.0
    %274 = vmatprep.subr.mxu0 0.0
    %275 = vmatpush1.msra.mxu0 0.0
    %276 = vmatprep.subr.mxu0 0.0
    %277 = vmatpush1.msra.mxu0 0.0
    %278 = vmatprep.subr.mxu0 0.0
    %279 = vmatpush1.msra.mxu0 0.0
    %280 = vmatprep.subr.mxu0 0.0
    %281 = vmatpush1.msra.mxu0 0.0
    %282 = vmatprep.subr.mxu0 0.0
    %283 = vmatpush1.msra.mxu0 0.0
    %284 = vmatprep.subr.mxu0 0.0
    %285 = vmatpush1.msra.mxu0 %v32
    %286 = vmatprep.subr.mxu0 0.0
    %287 = vmatpush1.msra.mxu0 %v31
    %288 = vmatprep.subr.mxu0 0.0
    %289 = vmatpush1.msra.mxu0 %v30
    %290 = vmatprep.subr.mxu0 0.0
    %291 = vmatpush1.msra.mxu0 %v29
    %292 = vmatprep.subr.mxu0 0.0
    %293 = vmatpush2.msra.mxu0 0.0
    %294 = vmatprep.subr.mxu0 0.0
    %295 = vmatpush2.msra.mxu0 0.0
    %296 = vmatprep.subr.mxu0 0.0
    %297 = vmatpush2.msra.mxu0 0.0
    %298 = vmatprep.subr.mxu0 0.0
    %299 = vmatpush2.msra.mxu0 0.0
    %300 = vmatprep.subr.mxu0 0.0
    %301 = vmatpush2.msra.mxu0 0.0
    %302 = vmatprep.subr.mxu0 0.0
    %303 = vmatpush2.msra.mxu0 0.0
    %304 = vmatprep.subr.mxu0 0.0
    %305 = vmatpush2.msra.mxu0 0.0
    %306 = vmatprep.subr.mxu0 0.0
    %307 = vmatpush2.msra.mxu0 0.0
    %308 = vmatprep.subr.mxu0 0.0
    %309 = vmatpush2.msra.mxu0 0.0
    %310 = vmatprep.subr.mxu0 0.0
    %311 = vmatpush2.msra.mxu0 0.0
    %312 = vmatprep.subr.mxu0 0.0
    %313 = vmatpush2.msra.mxu0 0.0
    %314 = vmatprep.subr.mxu0 0.0
    %315 = vmatpush2.msra.mxu0 0.0
    %316 = vmatprep.subr.mxu0 0.0
    %317 = vmatpush2.msra.mxu0 0.0
    %318 = vmatprep.subr.mxu0 0.0
    %319 = vmatpush2.msra.mxu0 0.0
    %320 = vmatprep.subr.mxu0 0.0
    %321 = vmatpush2.msra.mxu0 0.0
    %322 = vmatprep.subr.mxu0 0.0
    %323 = vmatpush2.msra.mxu0 0.0
    %324 = vmatprep.mubr.f32.mxu0 0.0
    %325 = vmatmul.mubr.f32.gmra.mxu0 %v258
    %v326 = vpop.f32.mrf.mxu0
    %v327 = vadd.f32 0.0, %v326
    %v328 = vpop.f32.mrf.mxu0
    %329 = vdwg.mxu0
    %v330 = vadd.f32 %v152, %v327
    %v331 = vtanh.pop %v330
    %v333 = vsel %vm181, %v331, 0
    %335 = vmatprep.subr.mxu0 0.0
    %336 = vmatpush1.msra.mxu0 0.0
    %337 = vmatprep.subr.mxu0 0.0
    %338 = vmatpush1.msra.mxu0 0.0
    %339 = vmatprep.subr.mxu0 0.0
    %340 = vmatpush1.msra.mxu0 0.0
    %341 = vmatprep.subr.mxu0 0.0
    %342 = vmatpush1.msra.mxu0 0.0
    %343 = vmatprep.subr.mxu0 0.0
    %344 = vmatpush1.msra.mxu0 0.0
    %345 = vmatprep.subr.mxu0 0.0
    %346 = vmatpush1.msra.mxu0 0.0
    %347 = vmatprep.subr.mxu0 0.0
    %348 = vmatpush1.msra.mxu0 0.0
    %349 = vmatprep.subr.mxu0 0.0
    %350 = vmatpush1.msra.mxu0 0.0
    %351 = vmatprep.subr.mxu0 0.0
    %352 = vmatpush1.msra.mxu0 0.0
    %353 = vmatprep.subr.mxu0 0.0
    %354 = vmatpush1.msra.mxu0 0.0
    %355 = vmatprep.subr.mxu0 0.0
    %356 = vmatpush1.msra.mxu0 0.0
    %357 = vmatprep.subr.mxu0 0.0
    %358 = vmatpush1.msra.mxu0 0.0
    %359 = vmatprep.subr.mxu0 0.0
    %360 = vmatpush1.msra.mxu0 %v32
    %361 = vmatprep.subr.mxu0 0.0
    %362 = vmatpush1.msra.mxu0 %v31
    %363 = vmatprep.subr.mxu0 0.0
    %364 = vmatpush1.msra.mxu0 %v30
    %365 = vmatprep.subr.mxu0 0.0
    %366 = vmatpush1.msra.mxu0 %v29
    %367 = vmatprep.subr.mxu0 0.0
    %368 = vmatpush2.msra.mxu0 0.0
    %369 = vmatprep.subr.mxu0 0.0
    %370 = vmatpush2.msra.mxu0 0.0
    %371 = vmatprep.subr.mxu0 0.0
    %372 = vmatpush2.msra.mxu0 0.0
    %373 = vmatprep.subr.mxu0 0.0
    %374 = vmatpush2.msra.mxu0 0.0
    %375 = vmatprep.subr.mxu0 0.0
    %376 = vmatpush2.msra.mxu0 0.0
    %377 = vmatprep.subr.mxu0 0.0
    %378 = vmatpush2.msra.mxu0 0.0
    %379 = vmatprep.subr.mxu0 0.0
    %380 = vmatpush2.msra.mxu0 0.0
    %381 = vmatprep.subr.mxu0 0.0
    %382 = vmatpush2.msra.mxu0 0.0
    %383 = vmatprep.subr.mxu0 0.0
    %384 = vmatpush2.msra.mxu0 0.0
    %385 = vmatprep.subr.mxu0 0.0
    %386 = vmatpush2.msra.mxu0 0.0
    %387 = vmatprep.subr.mxu0 0.0
    %388 = vmatpush2.msra.mxu0 0.0
    %389 = vmatprep.subr.mxu0 0.0
    %390 = vmatpush2.msra.mxu0 0.0
    %391 = vmatprep.subr.mxu0 0.0
    %392 = vmatpush2.msra.mxu0 0.0
    %393 = vmatprep.subr.mxu0 0.0
    %394 = vmatpush2.msra.mxu0 0.0
    %395 = vmatprep.subr.mxu0 0.0
    %396 = vmatpush2.msra.mxu0 0.0
    %397 = vmatprep.subr.mxu0 0.0
    %398 = vmatpush2.msra.mxu0 0.0
    %399 = vmatprep.mubr.f32.mxu0 0.0
    %400 = vmatmul.mubr.f32.gmra.mxu0 %v333
    %v401 = vpop.f32.mrf.mxu0
    %v402 = vadd.f32 0.0, %v401
    %v403 = vpop.f32.mrf.mxu0
    %404 = vdwg.mxu0
    %v405 = vadd.f32 %v157, %v402
    %v406 = vtanh.pop %v405
    %v408 = vsel %vm181, %v406, 0
    %410 = vmatprep.subr.mxu0 0.0
    %411 = vmatpush1.msra.mxu0 0.0
    %412 = vmatprep.subr.mxu0 0.0
    %413 = vmatpush1.msra.mxu0 0.0
    %414 = vmatprep.subr.mxu0 0.0
    %415 = vmatpush1.msra.mxu0 0.0
    %416 = vmatprep.subr.mxu0 0.0
    %417 = vmatpush1.msra.mxu0 0.0
    %418 = vmatprep.subr.mxu0 0.0
    %419 = vmatpush1.msra.mxu0 0.0
    %420 = vmatprep.subr.mxu0 0.0
    %421 = vmatpush1.msra.mxu0 0.0
    %422 = vmatprep.subr.mxu0 0.0
    %423 = vmatpush1.msra.mxu0 0.0
    %424 = vmatprep.subr.mxu0 0.0
    %425 = vmatpush1.msra.mxu0 0.0
    %426 = vmatprep.subr.mxu0 0.0
    %427 = vmatpush1.msra.mxu0 0.0
    %428 = vmatprep.subr.mxu0 0.0
    %429 = vmatpush1.msra.mxu0 0.0
    %430 = vmatprep.subr.mxu0 0.0
    %431 = vmatpush1.msra.mxu0 0.0
    %432 = vmatprep.subr.mxu0 0.0
    %433 = vmatpush1.msra.mxu0 0.0
    %434 = vmatprep.subr.mxu0 0.0
    %435 = vmatpush1.msra.mxu0 %v32
    %436 = vmatprep.subr.mxu0 0.0
    %437 = vmatpush1.msra.mxu0 %v31
    %438 = vmatprep.subr.mxu0 0.0
    %439 = vmatpush1.msra.mxu0 %v30
    %440 = vmatprep.subr.mxu0 0.0
    %441 = vmatpush1.msra.mxu0 %v29
    %442 = vmatprep.subr.mxu0 0.0
    %443 = vmatpush2.msra.mxu0 0.0
    %444 = vmatprep.subr.mxu0 0.0
    %445 = vmatpush2.msra.mxu0 0.0
    %446 = vmatprep.subr.mxu0 0.0
    %447 = vmatpush2.msra.mxu0 0.0
    %448 = vmatprep.subr.mxu0 0.0
    %449 = vmatpush2.msra.mxu0 0.0
    %450 = vmatprep.subr.mxu0 0.0
    %451 = vmatpush2.msra.mxu0 0.0
    %452 = vmatprep.subr.mxu0 0.0
    %453 = vmatpush2.msra.mxu0 0.0
    %454 = vmatprep.subr.mxu0 0.0
    %455 = vmatpush2.msra.mxu0 0.0
    %456 = vmatprep.subr.mxu0 0.0
    %457 = vmatpush2.msra.mxu0 0.0
    %458 = vmatprep.subr.mxu0 0.0
    %459 = vmatpush2.msra.mxu0 0.0
    %460 = vmatprep.subr.mxu0 0.0
    %461 = vmatpush2.msra.mxu0 0.0
    %462 = vmatprep.subr.mxu0 0.0
    %463 = vmatpush2.msra.mxu0 0.0
    %464 = vmatprep.subr.mxu0 0.0
    %465 = vmatpush2.msra.mxu0 0.0
    %466 = vmatprep.subr.mxu0 0.0
    %467 = vmatpush2.msra.mxu0 0.0
    %468 = vmatprep.subr.mxu0 0.0
    %469 = vmatpush2.msra.mxu0 0.0
    %470 = vmatprep.subr.mxu0 0.0
    %471 = vmatpush2.msra.mxu0 0.0
    %472 = vmatprep.subr.mxu0 0.0
    %473 = vmatpush2.msra.mxu0 0.0
    %474 = vmatprep.mubr.f32.mxu0 0.0
    %475 = vmatmul.mubr.f32.gmra.mxu0 %v408
    %v476 = vpop.f32.mrf.mxu0
    %v477 = vadd.f32 0.0, %v476
    %v478 = vpop.f32.mrf.mxu0
    %479 = vdwg.mxu0
    %v480 = vadd.f32 %v162, %v477
    %v481 = vtanh.pop %v480
    %v483 = vsel %vm181, %v481, 0
    %485 = vmatprep.subr.mxu0 0.0
    %486 = vmatpush1.msra.mxu0 0.0
    %487 = vmatprep.subr.mxu0 0.0
    %488 = vmatpush1.msra.mxu0 0.0
    %489 = vmatprep.subr.mxu0 0.0
    %490 = vmatpush1.msra.mxu0 0.0
    %491 = vmatprep.subr.mxu0 0.0
    %492 = vmatpush1.msra.mxu0 0.0
    %493 = vmatprep.subr.mxu0 0.0
    %494 = vmatpush1.msra.mxu0 0.0
    %495 = vmatprep.subr.mxu0 0.0
    %496 = vmatpush1.msra.mxu0 0.0
    %497 = vmatprep.subr.mxu0 0.0
    %498 = vmatpush1.msra.mxu0 0.0
    %499 = vmatprep.subr.mxu0 0.0
    %500 = vmatpush1.msra.mxu0 0.0
    %501 = vmatprep.subr.mxu0 0.0
    %502 = vmatpush1.msra.mxu0 0.0
    %503 = vmatprep.subr.mxu0 0.0
    %504 = vmatpush1.msra.mxu0 0.0
    %505 = vmatprep.subr.mxu0 0.0
    %506 = vmatpush1.msra.mxu0 0.0
    %507 = vmatprep.subr.mxu0 0.0
    %508 = vmatpush1.msra.mxu0 0.0
    %509 = vmatprep.subr.mxu0 0.0
    %510 = vmatpush1.msra.mxu0 %v32
    %511 = vmatprep.subr.mxu0 0.0
    %512 = vmatpush1.msra.mxu0 %v31
    %513 = vmatprep.subr.mxu0 0.0
    %514 = vmatpush1.msra.mxu0 %v30
    %515 = vmatprep.subr.mxu0 0.0
    %516 = vmatpush1.msra.mxu0 %v29
    %517 = vmatprep.subr.mxu0 0.0
    %518 = vmatpush2.msra.mxu0 0.0
    %519 = vmatprep.subr.mxu0 0.0
    %520 = vmatpush2.msra.mxu0 0.0
    %521 = vmatprep.subr.mxu0 0.0
    %522 = vmatpush2.msra.mxu0 0.0
    %523 = vmatprep.subr.mxu0 0.0
    %524 = vmatpush2.msra.mxu0 0.0
    %525 = vmatprep.subr.mxu0 0.0
    %526 = vmatpush2.msra.mxu0 0.0
    %527 = vmatprep.subr.mxu0 0.0
    %528 = vmatpush2.msra.mxu0 0.0
    %529 = vmatprep.subr.mxu0 0.0
    %530 = vmatpush2.msra.mxu0 0.0
    %531 = vmatprep.subr.mxu0 0.0
    %532 = vmatpush2.msra.mxu0 0.0
    %533 = vmatprep.subr.mxu0 0.0
    %534 = vmatpush2.msra.mxu0 0.0
    %535 = vmatprep.subr.mxu0 0.0
    %536 = vmatpush2.msra.mxu0 0.0
    %537 = vmatprep.subr.mxu0 0.0
    %538 = vmatpush2.msra.mxu0 0.0
    %539 = vmatprep.subr.mxu0 0.0
    %540 = vmatpush2.msra.mxu0 0.0
    %541 = vmatprep.subr.mxu0 0.0
    %542 = vmatpush2.msra.mxu0 0.0
    %543 = vmatprep.subr.mxu0 0.0
    %544 = vmatpush2.msra.mxu0 0.0
    %545 = vmatprep.subr.mxu0 0.0
    %546 = vmatpush2.msra.mxu0 0.0
    %547 = vmatprep.subr.mxu0 0.0
    %548 = vmatpush2.msra.mxu0 0.0
    %549 = vmatprep.mubr.f32.mxu0 0.0
    %550 = vmatmul.mubr.f32.gmra.mxu0 %v483
    %v551 = vpop.f32.mrf.mxu0
    %v552 = vadd.f32 0.0, %v551
    %v553 = vpop.f32.mrf.mxu0
    %554 = vdwg.mxu0
    %v555 = vadd.f32 %v167, %v552
    %v556 = vtanh.pop %v555
    %v558 = vsel %vm181, %v556, 0
    %560 = vmatprep.subr.mxu0 0.0
    %561 = vmatpush1.msra.mxu0 0.0
    %562 = vmatprep.subr.mxu0 0.0
    %563 = vmatpush1.msra.mxu0 0.0
    %564 = vmatprep.subr.mxu0 0.0
    %565 = vmatpush1.msra.mxu0 0.0
    %566 = vmatprep.subr.mxu0 0.0
    %567 = vmatpush1.msra.mxu0 0.0
    %568 = vmatprep.subr.mxu0 0.0
    %569 = vmatpush1.msra.mxu0 0.0
    %570 = vmatprep.subr.mxu0 0.0
    %571 = vmatpush1.msra.mxu0 0.0
    %572 = vmatprep.subr.mxu0 0.0
    %573 = vmatpush1.msra.mxu0 0.0
    %574 = vmatprep.subr.mxu0 0.0
    %575 = vmatpush1.msra.mxu0 0.0
    %576 = vmatprep.subr.mxu0 0.0
    %577 = vmatpush1.msra.mxu0 0.0
    %578 = vmatprep.subr.mxu0 0.0
    %579 = vmatpush1.msra.mxu0 0.0
    %580 = vmatprep.subr.mxu0 0.0
    %581 = vmatpush1.msra.mxu0 0.0
    %582 = vmatprep.subr.mxu0 0.0
    %583 = vmatpush1.msra.mxu0 0.0
    %584 = vmatprep.subr.mxu0 0.0
    %585 = vmatpush1.msra.mxu0 %v32
    %586 = vmatprep.subr.mxu0 0.0
    %587 = vmatpush1.msra.mxu0 %v31
    %588 = vmatprep.subr.mxu0 0.0
    %589 = vmatpush1.msra.mxu0 %v30
    %590 = vmatprep.subr.mxu0 0.0
    %591 = vmatpush1.msra.mxu0 %v29
    %592 = vmatprep.subr.mxu0 0.0
    %593 = vmatpush2.msra.mxu0 0.0
    %594 = vmatprep.subr.mxu0 0.0
    %595 = vmatpush2.msra.mxu0 0.0
    %596 = vmatprep.subr.mxu0 0.0
    %597 = vmatpush2.msra.mxu0 0.0
    %598 = vmatprep.subr.mxu0 0.0
    %599 = vmatpush2.msra.mxu0 0.0
    %600 = vmatprep.subr.mxu0 0.0
    %601 = vmatpush2.msra.mxu0 0.0
    %602 = vmatprep.subr.mxu0 0.0
    %603 = vmatpush2.msra.mxu0 0.0
    %604 = vmatprep.subr.mxu0 0.0
    %605 = vmatpush2.msra.mxu0 0.0
    %606 = vmatprep.subr.mxu0 0.0
    %607 = vmatpush2.msra.mxu0 0.0
    %608 = vmatprep.subr.mxu0 0.0
    %609 = vmatpush2.msra.mxu0 0.0
    %610 = vmatprep.subr.mxu0 0.0
    %611 = vmatpush2.msra.mxu0 0.0
    %612 = vmatprep.subr.mxu0 0.0
    %613 = vmatpush2.msra.mxu0 0.0
    %614 = vmatprep.subr.mxu0 0.0
    %615 = vmatpush2.msra.mxu0 0.0
    %616 = vmatprep.subr.mxu0 0.0
    %617 = vmatpush2.msra.mxu0 0.0
    %618 = vmatprep.subr.mxu0 0.0
    %619 = vmatpush2.msra.mxu0 0.0
    %620 = vmatprep.subr.mxu0 0.0
    %621 = vmatpush2.msra.mxu0 0.0
    %622 = vmatprep.subr.mxu0 0.0
    %623 = vmatpush2.msra.mxu0 0.0
    %624 = vmatprep.mubr.f32.mxu0 0.0
    %625 = vmatmul.mubr.f32.gmra.mxu0 %v558
    %v626 = vpop.f32.mrf.mxu0
    %v627 = vadd.f32 0.0, %v626
    %v628 = vpop.f32.mrf.mxu0
    %629 = vdwg.mxu0
    %v630 = vadd.f32 %v172, %v627
    %v631 = vtanh.pop %v630
    %v633 = vsel %vm181, %v631, 0
    %635 = vmatprep.subr.mxu0 0.0
    %636 = vmatpush1.msra.mxu0 0.0
    %637 = vmatprep.subr.mxu0 0.0
    %638 = vmatpush1.msra.mxu0 0.0
    %639 = vmatprep.subr.mxu0 0.0
    %640 = vmatpush1.msra.mxu0 0.0
    %641 = vmatprep.subr.mxu0 0.0
    %642 = vmatpush1.msra.mxu0 0.0
    %643 = vmatprep.subr.mxu0 0.0
    %644 = vmatpush1.msra.mxu0 0.0
    %645 = vmatprep.subr.mxu0 0.0
    %646 = vmatpush1.msra.mxu0 0.0
    %647 = vmatprep.subr.mxu0 0.0
    %648 = vmatpush1.msra.mxu0 0.0
    %649 = vmatprep.subr.mxu0 0.0
    %650 = vmatpush1.msra.mxu0 0.0
    %651 = vmatprep.subr.mxu0 0.0
    %652 = vmatpush1.msra.mxu0 0.0
    %653 = vmatprep.subr.mxu0 0.0
    %654 = vmatpush1.msra.mxu0 0.0
    %655 = vmatprep.subr.mxu0 0.0
    %656 = vmatpush1.msra.mxu0 0.0
    %657 = vmatprep.subr.mxu0 0.0
    %658 = vmatpush1.msra.mxu0 0.0
    %659 = vmatprep.subr.mxu0 0.0
    %660 = vmatpush1.msra.mxu0 %v32
    %661 = vmatprep.subr.mxu0 0.0
    %662 = vmatpush1.msra.mxu0 %v31
    %663 = vmatprep.subr.mxu0 0.0
    %664 = vmatpush1.msra.mxu0 %v30
    %665 = vmatprep.subr.mxu0 0.0
    %666 = vmatpush1.msra.mxu0 %v29
    %667 = vmatprep.subr.mxu0 0.0
    %668 = vmatpush2.msra.mxu0 0.0
    %669 = vmatprep.subr.mxu0 0.0
    %670 = vmatpush2.msra.mxu0 0.0
    %671 = vmatprep.subr.mxu0 0.0
    %672 = vmatpush2.msra.mxu0 0.0
    %673 = vmatprep.subr.mxu0 0.0
    %674 = vmatpush2.msra.mxu0 0.0
    %675 = vmatprep.subr.mxu0 0.0
    %676 = vmatpush2.msra.mxu0 0.0
    %677 = vmatprep.subr.mxu0 0.0
    %678 = vmatpush2.msra.mxu0 0.0
    %679 = vmatprep.subr.mxu0 0.0
    %680 = vmatpush2.msra.mxu0 0.0
    %681 = vmatprep.subr.mxu0 0.0
    %682 = vmatpush2.msra.mxu0 0.0
    %683 = vmatprep.subr.mxu0 0.0
    %684 = vmatpush2.msra.mxu0 0.0
    %685 = vmatprep.subr.mxu0 0.0
    %686 = vmatpush2.msra.mxu0 0.0
    %687 = vmatprep.subr.mxu0 0.0
    %688 = vmatpush2.msra.mxu0 0.0
    %689 = vmatprep.subr.mxu0 0.0
    %690 = vmatpush2.msra.mxu0 0.0
    %691 = vmatprep.subr.mxu0 0.0
    %692 = vmatpush2.msra.mxu0 0.0
    %693 = vmatprep.subr.mxu0 0.0
    %694 = vmatpush2.msra.mxu0 0.0
    %695 = vmatprep.subr.mxu0 0.0
    %696 = vmatpush2.msra.mxu0 0.0
    %697 = vmatprep.subr.mxu0 0.0
    %698 = vmatpush2.msra.mxu0 0.0
    %699 = vmatprep.mubr.f32.mxu0 0.0
    %700 = vmatmul.mubr.f32.gmra.mxu0 %v633
    %v701 = vpop.f32.mrf.mxu0
    %v702 = vadd.f32 0.0, %v701
    %v703 = vpop.f32.mrf.mxu0
    %704 = vdwg.mxu0
    %v705 = vadd.f32 %v177, %v702
    %v706 = vtanh.pop %v705
    %v707 = vld [vmem:[#allocation2 + $0x30] sm:$0xff]
    %v708 = vld [vmem:[#allocation2 + $0x38] sm:$0xff]
    %v709 = vld [vmem:[#allocation2 + $0x40] sm:$0xff]
    %v710 = vld [vmem:[#allocation2 + $0x48] sm:$0xff]
    %v711 = vld [vmem:[#allocation2 + $0x50] sm:$0xf]
    %v712 = vld [vmem:[#allocation2 + $0x58] sm:$0x1]
    %v713 = vld [vmem:[%s1] sm:$0xff]
    %v715 = vsel %vm46, %v713, 0
    %v718 = vsel %vm71, %v711, 0
    %720 = vmatprep.subr.mxu0 0.0
    %721 = vmatpush1.msra.mxu0 0.0
    %722 = vmatprep.subr.mxu0 0.0
    %723 = vmatpush1.msra.mxu0 0.0
    %724 = vmatprep.subr.mxu0 0.0
    %725 = vmatpush1.msra.mxu0 0.0
    %726 = vmatprep.subr.mxu0 0.0
    %727 = vmatpush1.msra.mxu0 0.0
    %728 = vmatprep.subr.mxu0 0.0
    %729 = vmatpush1.msra.mxu0 0.0
    %730 = vmatprep.subr.mxu0 0.0
    %731 = vmatpush1.msra.mxu0 0.0
    %732 = vmatprep.subr.mxu0 0.0
    %733 = vmatpush1.msra.mxu0 0.0
    %734 = vmatprep.subr.mxu0 0.0
    %735 = vmatpush1.msra.mxu0 0.0
    %736 = vmatprep.subr.mxu0 0.0
    %737 = vmatpush1.msra.mxu0 0.0
    %738 = vmatprep.subr.mxu0 0.0
    %739 = vmatpush1.msra.mxu0 0.0
    %740 = vmatprep.subr.mxu0 0.0
    %741 = vmatpush1.msra.mxu0 0.0
    %742 = vmatprep.subr.mxu0 0.0
    %743 = vmatpush1.msra.mxu0 0.0
    %744 = vmatprep.subr.mxu0 0.0
    %745 = vmatpush1.msra.mxu0 0.0
    %746 = vmatprep.subr.mxu0 0.0
    %747 = vmatpush1.msra.mxu0 0.0
    %748 = vmatprep.subr.mxu0 0.0
    %749 = vmatpush1.msra.mxu0 0.0
    %750 = vmatprep.subr.mxu0 0.0
    %751 = vmatpush1.msra.mxu0 %v718
    %752 = vmatprep.subr.mxu0 0.0
    %753 = vmatpush2.msra.mxu0 0.0
    %754 = vmatprep.subr.mxu0 0.0
    %755 = vmatpush2.msra.mxu0 0.0
    %756 = vmatprep.subr.mxu0 0.0
    %757 = vmatpush2.msra.mxu0 0.0
    %758 = vmatprep.subr.mxu0 0.0
    %759 = vmatpush2.msra.mxu0 0.0
    %760 = vmatprep.subr.mxu0 0.0
    %761 = vmatpush2.msra.mxu0 0.0
    %762 = vmatprep.subr.mxu0 0.0
    %763 = vmatpush2.msra.mxu0 0.0
    %764 = vmatprep.subr.mxu0 0.0
    %765 = vmatpush2.msra.mxu0 0.0
    %766 = vmatprep.subr.mxu0 0.0
    %767 = vmatpush2.msra.mxu0 0.0
    %768 = vmatprep.subr.mxu0 0.0
    %769 = vmatpush2.msra.mxu0 0.0
    %770 = vmatprep.subr.mxu0 0.0
    %771 = vmatpush2.msra.mxu0 0.0
    %772 = vmatprep.subr.mxu0 0.0
    %773 = vmatpush2.msra.mxu0 0.0
    %774 = vmatprep.subr.mxu0 0.0
    %775 = vmatpush2.msra.mxu0 0.0
    %776 = vmatprep.subr.mxu0 0.0
    %777 = vmatpush2.msra.mxu0 0.0
    %778 = vmatprep.subr.mxu0 0.0
    %779 = vmatpush2.msra.mxu0 0.0
    %780 = vmatprep.subr.mxu0 0.0
    %781 = vmatpush2.msra.mxu0 0.0
    %782 = vmatprep.subr.mxu0 0.0
    %783 = vmatpush2.msra.mxu0 0.0
    %784 = vmatprep.mubr.f32.mxu0 0.0
    %785 = vmatmul.mubr.f32.gmra.mxu0 %v715
    %v786 = vpop.f32.mrf.mxu0
    %v787 = vadd.f32 0.0, %v786
    %v788 = vpop.f32.mrf.mxu0
    %789 = vdwg.mxu0
    %v791 = vsel %vm181, %v706, 0
    %793 = vmatprep.subr.mxu0 0.0
    %794 = vmatpush1.msra.mxu0 0.0
    %795 = vmatprep.subr.mxu0 0.0
    %796 = vmatpush1.msra.mxu0 0.0
    %797 = vmatprep.subr.mxu0 0.0
    %798 = vmatpush1.msra.mxu0 0.0
    %799 = vmatprep.subr.mxu0 0.0
    %800 = vmatpush1.msra.mxu0 0.0
    %801 = vmatprep.subr.mxu0 0.0
    %802 = vmatpush1.msra.mxu0 0.0
    %803 = vmatprep.subr.mxu0 0.0
    %804 = vmatpush1.msra.mxu0 0.0
    %805 = vmatprep.subr.mxu0 0.0
    %806 = vmatpush1.msra.mxu0 0.0
    %807 = vmatprep.subr.mxu0 0.0
    %808 = vmatpush1.msra.mxu0 0.0
    %809 = vmatprep.subr.mxu0 0.0
    %810 = vmatpush1.msra.mxu0 0.0
    %811 = vmatprep.subr.mxu0 0.0
    %812 = vmatpush1.msra.mxu0 0.0
    %813 = vmatprep.subr.mxu0 0.0
    %814 = vmatpush1.msra.mxu0 0.0
    %815 = vmatprep.subr.mxu0 0.0
    %816 = vmatpush1.msra.mxu0 0.0
    %817 = vmatprep.subr.mxu0 0.0
    %818 = vmatpush1.msra.mxu0 %v710
    %819 = vmatprep.subr.mxu0 0.0
    %820 = vmatpush1.msra.mxu0 %v709
    %821 = vmatprep.subr.mxu0 0.0
    %822 = vmatpush1.msra.mxu0 %v708
    %823 = vmatprep.subr.mxu0 0.0
    %824 = vmatpush1.msra.mxu0 %v707
    %825 = vmatprep.subr.mxu0 0.0
    %826 = vmatpush2.msra.mxu0 0.0
    %827 = vmatprep.subr.mxu0 0.0
    %828 = vmatpush2.msra.mxu0 0.0
    %829 = vmatprep.subr.mxu0 0.0
    %830 = vmatpush2.msra.mxu0 0.0
    %831 = vmatprep.subr.mxu0 0.0
    %832 = vmatpush2.msra.mxu0 0.0
    %833 = vmatprep.subr.mxu0 0.0
    %834 = vmatpush2.msra.mxu0 0.0
    %835 = vmatprep.subr.mxu0 0.0
    %836 = vmatpush2.msra.mxu0 0.0
    %837 = vmatprep.subr.mxu0 0.0
    %838 = vmatpush2.msra.mxu0 0.0
    %839 = vmatprep.subr.mxu0 0.0
    %840 = vmatpush2.msra.mxu0 0.0
    %841 = vmatprep.subr.mxu0 0.0
    %842 = vmatpush2.msra.mxu0 0.0
    %843 = vmatprep.subr.mxu0 0.0
    %844 = vmatpush2.msra.mxu0 0.0
    %845 = vmatprep.subr.mxu0 0.0
    %846 = vmatpush2.msra.mxu0 0.0
    %847 = vmatprep.subr.mxu0 0.0
    %848 = vmatpush2.msra.mxu0 0.0
    %849 = vmatprep.subr.mxu0 0.0
    %850 = vmatpush2.msra.mxu0 0.0
    %851 = vmatprep.subr.mxu0 0.0
    %852 = vmatpush2.msra.mxu0 0.0
    %853 = vmatprep.subr.mxu0 0.0
    %854 = vmatpush2.msra.mxu0 0.0
    %855 = vmatprep.subr.mxu0 0.0
    %856 = vmatpush2.msra.mxu0 0.0
    %857 = vmatprep.mubr.f32.mxu0 0.0
    %858 = vmatmul.mubr.f32.gmra.mxu0 %v791
    %v859 = vpop.f32.mrf.mxu0
    %v860 = vadd.f32 %v787, %v859
    %v861 = vpop.f32.mrf.mxu0
    %862 = vdwg.mxu0
    %v863 = vlaneseq
    %v864 = vshrl.u32 %v863, 7
    %v865 = vsub.s32 0, %v864
    %v866 = vrot.slane %v712, %v865
    %v867 = vadd.f32 %v860, %v866
    %v868 = vmax.f32 %v867, 0.0
    %v869 = vld [vmem:[#allocation2 + $0x68] sm:$0x1]
    %v870 = vld [vmem:[#allocation2 + $0x60] sm:$0x1]
    %v871 = vlaneseq
    %v872 = vshrl.u32 %v871, 7
    %v873 = vsub.s32 0, %v872
    %v874 = vrot.slane %v870, %v873
    %v875 = vmul.f32 %v868, %v874
    %vm876 = vcmask 130048
    %v877 = vsel %vm876, %v875, 0.0
    %878 = vadd.xlane.f32.xlu0 %v877
    %v879 = vpop.xlane.xlu0 %878
    %v880 = vlaneseq
    %v881 = vshrl.u32 %v880, 7
    %v882 = vsub.s32 0, %v881
    %v883 = vrot.slane %v869, %v882
    %v884 = vadd.f32 %v879, %v883
    %v885 = vxor.u32 %v884, 2147483648
    %v886 = vmul.f32 %v885, 1.442695
    %v887 = vpow.pop %v886
    %v888 = vadd.f32 %v887, 1.0
    %v889 = vrcp.pop %v888
    %v890 = vmul.f32 1.0, %v889
    %vm891 = vcmask 7168
    %892 = vst.msk [vmem:[%s3] sm:$0xff] %vm891, %v890
    // Predicated region
    $region18: #{tpu_custom_call.1} parent=1 // pred_check
      _
    $region19: #{tpu_custom_call.1} parent=1 // pred_check_branch
      %894 = sbr.rel (0) target = $region21
    $region20: #{tpu_custom_call.1} parent=1 // pred_region
      _
    $region21: #{tpu_custom_call.1} parent=1 // pred_fallthru
      _
    // Predicated region
    $region22: #{tpu_custom_call.1} parent=1 // pred_check
      _
    $region23: #{tpu_custom_call.1} parent=1 // pred_check_branch
      %896 = sbr.rel (0) target = $region25
    $region24: #{tpu_custom_call.1} parent=1 // pred_region
      _
    $region25: #{tpu_custom_call.1} parent=1 // pred_fallthru
      _
    %897 = vsyncpa [#allocation3], 1

</llo_original>
